<compile_context>
chip_gen: v7x
topology: tpu7x:2x2x1
jax: 0.10.0
libtpu: 0.0.40
codegen_flags: <defaults>
</compile_context>

<pallas_src>
import functools

import jax
import jax.numpy as jnp
import numpy as np
from jax.experimental import pallas as pl
from jax.experimental.pallas import tpu as pltpu


def _round_up(x, m):
    return ((x + m - 1) // m) * m


def _ukd_kernel(*refs, alpha, c_t, hw, tile_n, has_mask):
    """One grid step processes a (c_in, tile_n) slab of pixels of one batch image.

    refs (in order):
      x_ref : (c_in, tile_n)  new-model logits  (batch dim squeezed)
      t_ref : (c_t,  tile_n)  old-model logits
      m_ref : (1,    tile_n)  optional pixel mask (only if has_mask)
      o_ref : (1, 1)          per-batch partial sum of the (un-negated) loss
      acc   : (1, tile_n)     VMEM vector accumulator
    """
    if has_mask:
        x_ref, t_ref, m_ref, o_ref, acc_ref = refs
    else:
        x_ref, t_ref, o_ref, acc_ref = refs
        m_ref = None

    i = pl.program_id(1)

    @pl.when(i == 0)
    def _():
        acc_ref[...] = jnp.zeros_like(acc_ref)

    x = x_ref[...].astype(jnp.float32)                        # (c_in, T)
    t = t_ref[...].astype(jnp.float32) * jnp.float32(alpha)   # (c_t , T)

    needs_tail = (hw % tile_n) != 0   # static python bool
    if needs_tail:
        lane = jax.lax.broadcasted_iota(jnp.int32, (1, tile_n), 1)
        valid = (i * tile_n + lane) < hw                      # (1, T) bool
        x = jnp.where(valid, x, 0.0)                          # keep OOB lanes finite
        t = jnp.where(valid, t, 0.0)

    # Fused logsumexp: full-channel and background-group share one exp().
    m_all = jnp.max(x, axis=0, keepdims=True)                 # (1, T)
    e = jnp.exp(x - m_all)                                    # (c_in, T)
    den = m_all + jnp.log(jnp.sum(e, axis=0, keepdims=True))  # (1, T)
    # background group = channel 0 + all new channels [c_t:]
    bkg_sum = e[0:1, :] + jnp.sum(e[c_t:, :], axis=0, keepdims=True)
    lse_bkg = m_all + jnp.log(jnp.maximum(bkg_sum, jnp.float32(1e-37)))  # (1, T)

    # labels = softmax(alpha * targets) over the old-model channels
    m_t = jnp.max(t, axis=0, keepdims=True)
    e_t = jnp.exp(t - m_t)                                    # (c_t, T)
    inv_sum_t = 1.0 / jnp.sum(e_t, axis=0, keepdims=True)     # (1, T)

    # loss = l0*(lse_bkg - den) + sum_{j>=1} l_j*(x_j - den)
    #      = l0*lse_bkg + sum_{j>=1} l_j*x_j - den           (sum(labels) == 1)
    lbl0 = e_t[0:1, :] * inv_sum_t                            # (1, T)
    rest = jnp.sum(e_t[1:, :] * x[1:c_t, :], axis=0, keepdims=True) * inv_sum_t
    loss = lbl0 * lse_bkg + rest - den                        # (1, T)

    if has_mask:
        loss = loss * m_ref[...].astype(jnp.float32)
    if needs_tail:
        loss = jnp.where(valid, loss, 0.0)

    acc_ref[...] += loss                                      # cheap VPU add per step

    @pl.when(i == pl.num_programs(1) - 1)
    def _():
        # single cross-lane reduce per batch row
        o_ref[...] = jnp.sum(acc_ref[...]).reshape(1, 1)


def unbiased_kd_loss(inputs, targets, mask=None, *, reduction='mean',
                     alpha=1.0, tile_n=2048):
    """inputs: (B, C_in, H, W); targets: (B, C_t, H, W); mask: (B, H, W) or None."""
    if reduction not in ('mean', 'sum'):
        # TODO(synk): reduction='none' would need a per-pixel (B, H, W) output spec.
        raise NotImplementedError("only 'mean' and 'sum' reductions are implemented")

    B, c_in, H, W = inputs.shape
    c_t = targets.shape[1]
    assert c_t < c_in, "inputs must have more channels than targets (new classes)"
    hw = H * W
    n_total = B * hw

    # Lane-dense tile: multiple of 128, no larger than the (rounded-up) spatial size.
    tile_n = max(128, _round_up(int(tile_n), 128))
    tile_n = min(tile_n, _round_up(hw, 128))
    n_tiles = pl.cdiv(hw, tile_n)

    # Free reshapes (collapse trailing contiguous dims); NO transpose/relayout.
    x = inputs.reshape(B, c_in, hw)
    t = targets.reshape(B, c_t, hw)

    in_specs = [
        pl.BlockSpec((None, c_in, tile_n), lambda b, i: (b, 0, i)),
        pl.BlockSpec((None, c_t, tile_n), lambda b, i: (b, 0, i)),
    ]
    args = [x, t]
    has_mask = mask is not None
    if has_mask:
        m = mask.astype(jnp.float32).reshape(B, 1, hw)
        in_specs.append(pl.BlockSpec((None, 1, tile_n), lambda b, i: (b, 0, i)))
        args.append(m)

    kernel = functools.partial(
        _ukd_kernel, alpha=float(alpha), c_t=c_t, hw=hw,
        tile_n=tile_n, has_mask=has_mask)

    partials = pl.pallas_call(
        kernel,
        out_shape=jax.ShapeDtypeStruct((B, 1, 1), jnp.float32),
        grid_spec=pltpu.PrefetchScalarGridSpec(
            num_scalar_prefetch=0,
            grid=(B, n_tiles),
            in_specs=in_specs,
            out_specs=pl.BlockSpec((None, 1, 1), lambda b, i: (b, 0, 0)),
            scratch_shapes=[pltpu.VMEM((1, tile_n), jnp.float32)],
        ),
        compiler_params=pltpu.CompilerParams(
            # batch axis parallel (2-TC split on v7x), pixel-tile axis is the reduction
            dimension_semantics=("parallel", "arbitrary"),
            vmem_limit_bytes=64 * 1024 * 1024,
        ),
    )(*args)

    total = jnp.sum(partials)
    if reduction == 'mean':
        return -total / jnp.float32(n_total)
    return -total


def _reference(inputs, targets, mask=None, reduction='mean', alpha=1.0):
    """Pure-JAX port of the PyTorch forward, for verification."""
    c_in = inputs.shape[1]
    c_t = targets.shape[1]
    targets = targets * alpha
    new_bkg_idx = jnp.array([0] + list(range(c_t, c_in)), dtype=jnp.int32)
    den = jax.nn.logsumexp(inputs, axis=1)                          # (B,H,W)
    outputs_no_bgk = inputs[:, 1:c_t] - den[:, None]                # (B,C_t-1,H,W)
    outputs_bkg = jax.nn.logsumexp(jnp.take(inputs, new_bkg_idx, axis=1), axis=1) - den
    labels = jax.nn.softmax(targets, axis=1)
    loss = labels[:, 0] * outputs_bkg + (labels[:, 1:] * outputs_no_bgk).sum(axis=1)
    if mask is not None:
        loss = loss * mask.astype(jnp.float32)
    if reduction == 'mean':
        return -jnp.mean(loss)
    elif reduction == 'sum':
        return -jnp.sum(loss)
    return -loss


if __name__ == "__main__":
    key = jax.random.PRNGKey(0)
    k1, k2, k3, k4, k5 = jax.random.split(key, 5)

    # Case 1: aligned spatial size, with mask, mean reduction.
    B, C_IN, C_T, H, W = 2, 6, 4, 16, 16   # 2 new classes, B*H*W = 512 pixels
    inputs = jax.random.normal(k1, (B, C_IN, H, W), jnp.float32)
    targets = jax.random.normal(k2, (B, C_T, H, W), jnp.float32)
    mask = (jax.random.uniform(k3, (B, H, W)) > 0.3).astype(jnp.float32)

    out = jax.block_until_ready(
        unbiased_kd_loss(inputs, targets, mask, reduction='mean', alpha=1.0))
    ref = _reference(inputs, targets, mask, reduction='mean', alpha=1.0)
    np.testing.assert_allclose(np.asarray(out), np.asarray(ref), rtol=1e-4, atol=1e-5)

    # Case 2: no mask (fast path without the mask stream), mean reduction.
    out2 = jax.block_until_ready(unbiased_kd_loss(inputs, targets, None))
    ref2 = _reference(inputs, targets, None)
    np.testing.assert_allclose(np.asarray(out2), np.asarray(ref2), rtol=1e-4, atol=1e-5)

    # Case 3: ragged spatial size (H*W not a multiple of 128) exercising the
    # in-kernel tail mask, sum reduction.
    Hr, Wr = 10, 10
    inputs_r = jax.random.normal(k4, (B, C_IN, Hr, Wr), jnp.float32)
    targets_r = jax.random.normal(k5, (B, C_T, Hr, Wr), jnp.float32)
    out3 = jax.block_until_ready(
        unbiased_kd_loss(inputs_r, targets_r, None, reduction='sum'))
    ref3 = _reference(inputs_r, targets_r, None, reduction='sum')
    np.testing.assert_allclose(np.asarray(out3), np.asarray(ref3), rtol=1e-4, atol=1e-4)

    print("KERNEL_OK")
</pallas_src>

<mosaic_0001>
module attributes {stable_mosaic.version = 11 : i64} {
  func.func @_ukd_kernel(%arg0: i32, %arg1: i32, %arg2: memref<1x6x256xf32, #tpu.memory_space<vmem>>, %arg3: memref<1x4x256xf32, #tpu.memory_space<vmem>>, %arg4: memref<1x1x256xf32, #tpu.memory_space<vmem>>, %arg5: memref<1x1x1xf32, #tpu.memory_space<vmem>>, %arg6: memref<1x256xf32, #tpu.memory_space<vmem>>) attributes {dimension_semantics = [#tpu.dimension_semantics<parallel>, #tpu.dimension_semantics<arbitrary>], iteration_bounds = array<i64: 2, 1>, scalar_prefetch = 0 : i64, scratch_operands = 1 : i64, tpu.core_type = #tpu.core_type<tc>, window_params = [{transform_indices = @transform_0, window_bounds = array<i64: 1, 6, 256>}, {transform_indices = @transform_1, window_bounds = array<i64: 1, 4, 256>}, {transform_indices = @transform_2, window_bounds = array<i64: 1, 1, 256>}, {transform_indices = @transform_3, window_bounds = array<i64: 1, 1, 1>}]} {
    %c0_i32 = arith.constant 0 : i32
    %0 = arith.cmpi eq, %arg1, %c0_i32 : i32
    %1 = arith.extui %0 : i1 to i32
    %c0_i32_0 = arith.constant 0 : i32
    %2 = arith.cmpi ne, %1, %c0_i32_0 : i32
    scf.if %2 {
      %cst_23 = arith.constant 0.000000e+00 : f32
      %56 = vector.broadcast %cst_23 : f32 to vector<1x256xf32>
      %c0_24 = arith.constant 0 : index
      %c0_25 = arith.constant 0 : index
      %57 = vector.load %arg6[%c0_24, %c0_25] : memref<1x256xf32, #tpu.memory_space<vmem>>, vector<1x256xf32>
      tpu.vector_store %arg6[%c0_24, %c0_25], %56 {strides = array<i32>} : memref<1x256xf32, #tpu.memory_space<vmem>>, vector<1x256xf32>,
    } else {
    }
    %c0 = arith.constant 0 : index
    %c0_1 = arith.constant 0 : index
    %c0_2 = arith.constant 0 : index
    %3 = vector.load %arg2[%c0, %c0_1, %c0_2] : memref<1x6x256xf32, #tpu.memory_space<vmem>>, vector<1x6x256xf32>
    %4 = vector.shape_cast %3 : vector<1x6x256xf32> to vector<6x256xf32>
    %c0_3 = arith.constant 0 : index
    %c0_4 = arith.constant 0 : index
    %c0_5 = arith.constant 0 : index
    %5 = vector.load %arg3[%c0_3, %c0_4, %c0_5] : memref<1x4x256xf32, #tpu.memory_space<vmem>>, vector<1x4x256xf32>
    %6 = vector.shape_cast %5 : vector<1x4x256xf32> to vector<4x256xf32>
    %cst = arith.constant 1.000000e+00 : f32
    %7 = vector.broadcast %cst : f32 to vector<4x256xf32>
    %8 = arith.mulf %6, %7 : vector<4x256xf32>
    %cst_6 = arith.constant dense<0xFF800000> : vector<256xf32>
    %9 = vector.multi_reduction <maximumf>, %4, %cst_6 [0] : vector<6x256xf32> to vector<256xf32>
    %10 = vector.shape_cast %9 : vector<256xf32> to vector<1x256xf32>
    %11 = vector.broadcast %10 : vector<1x256xf32> to vector<6x256xf32>
    %12 = arith.subf %4, %11 : vector<6x256xf32>
    %13 = math.exp %12 : vector<6x256xf32>
    %cst_7 = arith.constant dense<0.000000e+00> : vector<256xf32>
    %14 = vector.multi_reduction <add>, %13, %cst_7 [0] : vector<6x256xf32> to vector<256xf32>
    %15 = vector.shape_cast %14 : vector<256xf32> to vector<1x256xf32>
    %16 = math.log %15 : vector<1x256xf32>
    %17 = arith.addf %10, %16 : vector<1x256xf32>
    %18 = vector.extract_strided_slice %13 {offsets = [0, 0], sizes = [1, 256], strides = [1, 1]} : vector<6x256xf32> to vector<1x256xf32>
    %19 = vector.extract_strided_slice %13 {offsets = [4, 0], sizes = [2, 256], strides = [1, 1]} : vector<6x256xf32> to vector<2x256xf32>
    %cst_8 = arith.constant dense<0.000000e+00> : vector<256xf32>
    %20 = vector.multi_reduction <add>, %19, %cst_8 [0] : vector<2x256xf32> to vector<256xf32>
    %21 = vector.shape_cast %20 : vector<256xf32> to vector<1x256xf32>
    %22 = arith.addf %18, %21 : vector<1x256xf32>
    %cst_9 = arith.constant 9.99999991E-38 : f32
    %23 = vector.broadcast %cst_9 : f32 to vector<1x256xf32>
    %24 = arith.maximumf %22, %23 : vector<1x256xf32>
    %25 = math.log %24 : vector<1x256xf32>
    %26 = arith.addf %10, %25 : vector<1x256xf32>
    %cst_10 = arith.constant dense<0xFF800000> : vector<256xf32>
    %27 = vector.multi_reduction <maximumf>, %8, %cst_10 [0] : vector<4x256xf32> to vector<256xf32>
    %28 = vector.shape_cast %27 : vector<256xf32> to vector<1x256xf32>
    %29 = vector.broadcast %28 : vector<1x256xf32> to vector<4x256xf32>
    %30 = arith.subf %8, %29 : vector<4x256xf32>
    %31 = math.exp %30 : vector<4x256xf32>
    %cst_11 = arith.constant dense<0.000000e+00> : vector<256xf32>
    %32 = vector.multi_reduction <add>, %31, %cst_11 [0] : vector<4x256xf32> to vector<256xf32>
    %33 = vector.shape_cast %32 : vector<256xf32> to vector<1x256xf32>
    %cst_12 = arith.constant 1.000000e+00 : f32
    %34 = vector.broadcast %cst_12 : f32 to vector<1x256xf32>
    %35 = arith.divf %34, %33 : vector<1x256xf32>
    %36 = vector.extract_strided_slice %31 {offsets = [0, 0], sizes = [1, 256], strides = [1, 1]} : vector<4x256xf32> to vector<1x256xf32>
    %37 = arith.mulf %36, %35 : vector<1x256xf32>
    %38 = vector.extract_strided_slice %31 {offsets = [1, 0], sizes = [3, 256], strides = [1, 1]} : vector<4x256xf32> to vector<3x256xf32>
    %39 = vector.extract_strided_slice %4 {offsets = [1, 0], sizes = [3, 256], strides = [1, 1]} : vector<6x256xf32> to vector<3x256xf32>
    %40 = arith.mulf %38, %39 : vector<3x256xf32>
    %cst_13 = arith.constant dense<0.000000e+00> : vector<256xf32>
    %41 = vector.multi_reduction <add>, %40, %cst_13 [0] : vector<3x256xf32> to vector<256xf32>
    %42 = vector.shape_cast %41 : vector<256xf32> to vector<1x256xf32>
    %43 = arith.mulf %42, %35 : vector<1x256xf32>
    %44 = arith.mulf %37, %26 : vector<1x256xf32>
    %45 = arith.addf %44, %43 : vector<1x256xf32>
    %46 = arith.subf %45, %17 : vector<1x256xf32>
    %c0_14 = arith.constant 0 : index
    %c0_15 = arith.constant 0 : index
    %c0_16 = arith.constant 0 : index
    %47 = vector.load %arg4[%c0_14, %c0_15, %c0_16] : memref<1x1x256xf32, #tpu.memory_space<vmem>>, vector<1x1x256xf32>
    %48 = vector.shape_cast %47 : vector<1x1x256xf32> to vector<1x256xf32>
    %49 = arith.mulf %46, %48 : vector<1x256xf32>
    %c0_17 = arith.constant 0 : index
    %c0_18 = arith.constant 0 : index
    %50 = vector.load %arg6[%c0_17, %c0_18] : memref<1x256xf32, #tpu.memory_space<vmem>>, vector<1x256xf32>
    %51 = arith.addf %50, %49 : vector<1x256xf32>
    %c0_19 = arith.constant 0 : index
    %c0_20 = arith.constant 0 : index
    %52 = vector.load %arg6[%c0_19, %c0_20] : memref<1x256xf32, #tpu.memory_space<vmem>>, vector<1x256xf32>
    tpu.vector_store %arg6[%c0_19, %c0_20], %51 {strides = array<i32>} : memref<1x256xf32, #tpu.memory_space<vmem>>, vector<1x256xf32>,
    %c0_i32_21 = arith.constant 0 : i32
    %53 = arith.cmpi eq, %arg1, %c0_i32_21 : i32
    %54 = arith.extui %53 : i1 to i32
    %c0_i32_22 = arith.constant 0 : i32
    %55 = arith.cmpi ne, %54, %c0_i32_22 : i32
    scf.if %55 {
      %c0_23 = arith.constant 0 : index
      %c0_24 = arith.constant 0 : index
      %56 = vector.load %arg6[%c0_23, %c0_24] : memref<1x256xf32, #tpu.memory_space<vmem>>, vector<1x256xf32>
      %57 = vector.shape_cast %56 : vector<1x256xf32> to vector<1x1x256xf32>
      %cst_25 = arith.constant dense<0.000000e+00> : vector<1xf32>
      %58 = vector.multi_reduction <add>, %57, %cst_25 [1, 2] : vector<1x1x256xf32> to vector<1xf32>
      %59 = vector.shape_cast %58 : vector<1xf32> to vector<1x1x1xf32>
      %60 = vector.extract %59[0, 0, 0] : f32 from vector<1x1x1xf32>
      %61 = vector.broadcast %60 : f32 to vector<1x1xf32>
      %c0_26 = arith.constant 0 : index
      %c0_27 = arith.constant 0 : index
      %c0_28 = arith.constant 0 : index
      %62 = vector.load %arg5[%c0_26, %c0_27, %c0_28] : memref<1x1x1xf32, #tpu.memory_space<vmem>>, vector<1x1x1xf32>
      %63 = vector.shape_cast %62 : vector<1x1x1xf32> to vector<1x1xf32>
      %64 = vector.shape_cast %61 : vector<1x1xf32> to vector<1x1x1xf32>
      tpu.vector_store %arg5[%c0_26, %c0_27, %c0_28], %64 {strides = array<i32>} : memref<1x1x1xf32, #tpu.memory_space<vmem>>, vector<1x1x1xf32>,
    } else {
    }
    return
  }
  func.func @transform_0(%arg0: i32, %arg1: i32) -> (i32, i32, i32) {
    %c0_i32 = arith.constant 0 : i32
    %c0_i32_0 = arith.constant 0 : i32
    return %arg0, %c0_i32, %arg1 : i32, i32, i32
  }
  func.func @transform_1(%arg0: i32, %arg1: i32) -> (i32, i32, i32) {
    %c0_i32 = arith.constant 0 : i32
    %c0_i32_0 = arith.constant 0 : i32
    return %arg0, %c0_i32, %arg1 : i32, i32, i32
  }
  func.func @transform_2(%arg0: i32, %arg1: i32) -> (i32, i32, i32) {
    %c0_i32 = arith.constant 0 : i32
    %c0_i32_0 = arith.constant 0 : i32
    return %arg0, %c0_i32, %arg1 : i32, i32, i32
  }
  func.func @transform_3(%arg0: i32, %arg1: i32) -> (i32, i32, i32) {
    %c0_i32 = arith.constant 0 : i32
    %c0_i32_0 = arith.constant 0 : i32
    %c0_i32_1 = arith.constant 0 : i32
    return %arg0, %c0_i32, %c0_i32_0 : i32, i32, i32
  }
}

</mosaic_0001>

<llo_original>
// kernel: tpu_custom_call.1
$region0: #{tpu_custom_call.1}
  #allocation0 [shape = 'u32[]', space=smem, size = 0x4, offset = 0x4, fixed_abs, tag = 'smem constant byte address 0x4 - core index']
  #allocation1 [shape = 'u32[144,128]{1,0:T(1,128)}', space=vmem, size = 0x12000, scoped, tag = 'internal scratch']
  #allocation2 [shape = 'f32[1,256]{1,0:T(1,128)}', space=vmem, size = 0x400, scoped, tag = 'scratch operand']
  %s0 = inlined_call_operand.hbm [shape: f32[2,6,256], index: 0, kind: input, shape index: {}]
  %s1 = inlined_call_operand.hbm [shape: f32[2,4,256], index: 1, kind: input, shape index: {}]
  %s2 = inlined_call_operand.hbm [shape: f32[2,1,256], index: 2, kind: input, shape index: {}]
  %s3 = inlined_call_operand.hbm [shape: f32[2,1,1], index: 3, kind: output, shape index: {}]
  %s4 = sld [smem:[#allocation0]]
  $region65: #{tpu_custom_call.1} parent=0
    _
  %s6 = ssub.s32 1, %s4
  %s7 = scalar_select 0, %s6, %s4
  $region1: #{tpu_custom_call.1} parent=0
    #allocation3 [shape = 'u8[16384]{0}', space=vmem, size = 0x4000, scoped, tag = 'input window, operand 0']
    #allocation4 [shape = 's32[2]{0}', space=sflag, size = 0x8, scoped, tag = 'scoped memory for tpu_custom_call.1']
    #allocation5 [shape = 's32[2]{0}', space=sflag, size = 0x8, scoped, tag = 'scoped memory for tpu_custom_call.1']
    #allocation6 [shape = 'u8[8192]{0}', space=vmem, size = 0x2000, scoped, tag = 'input window, operand 1']
    #allocation7 [shape = 's32[2]{0}', space=sflag, size = 0x8, scoped, tag = 'scoped memory for tpu_custom_call.1']
    #allocation8 [shape = 'u8[2048]{0}', space=vmem, size = 0x800, scoped, tag = 'input window, operand 2']
    #allocation9 [shape = 'u8[1024]{0}', space=vmem, size = 0x400, scoped, tag = 'output window, operand 0']
    %8 = vsyncpa [#allocation4], 0
    %s9 = scalar_lea.sflag [#allocation4], 1
    %10 = vsyncpa %s9, 0
    %11 = vsyncpa [#allocation7], 0
    %s12 = scalar_lea.sflag [#allocation7], 1
    %13 = vsyncpa %s12, 0
    %14 = vsyncpa [#allocation5], 0
    %s15 = scalar_lea.sflag [#allocation5], 1
    %16 = vsyncpa %s15, 0
    loop: start=0, step=1, limit=4
    $region2: #{tpu_custom_call.1} parent=1 // loop_pre_header
      _
    $region3: #{tpu_custom_call.1} parent=1 // loop_header
      %s18 = sphi 0, %s22
      %p19 = scmp.ge.s32.totalorder %s18, 4
      %s25 = sphi 0, %s37
      %s26 = sphi 0, %s33
      %s27 = sphi 0, %s25
      %s28 = sphi 0, %s26
      %s29 = sphi 0, %s27
      %s30 = sphi 0, %s28
      %s42 = sphi 0, %s44
      %s45 = sphi 0, %s42
      %s46 = sphi 0, %s45
      %s62 = sphi 0, %s46
      %s70 = sphi 0, %s72
      %s73 = sphi 0, %s70
      %s74 = sphi 0, %s73
      %s90 = sphi 0, %s74
      %s98 = sphi 0, %s100
      %s101 = sphi 0, %s98
      %s102 = sphi 0, %s101
      %s118 = sphi 0, %s102
      %s124 = sphi 0, %s126
      %s127 = sphi 0, %s124
      %s128 = sphi 0, %s127
      %s144 = sphi 0, %s128
    $region4: #{tpu_custom_call.1} parent=1 // loop_header_branch
      %21 = sbr.rel (%p19) target = $region8
    $region5: #{tpu_custom_call.1} parent=1 // loop_body
      %s23 = ssub.s32 %s18, 1
      %s24 = ssub.s32 %s18, 2
      %s31 = sadd.s32 1, %s26
      %p32 = scmp.ge.s32.totalorder %s31, 1
      %s33 = scalar_select %p32, 0, %s31
      %s34 = sadd.s32 1, %s25
      %s35 = scalar_select %p32, %s34, %s25
      %p36 = scmp.ge.s32.totalorder %s35, 2
      %s37 = scalar_select %p36, 0, %s35
      %s38 = ssub.s32 %s25, %s37
      %s39 = ssub.s32 %s26, %s33
      %s40 = sor.u32 %s38, %s39
      %p41 = scmp.eq.s32.totalorder %s40, 0
      %s43 = sadd.s32 %s42, 1
      %s44 = scalar_select %p41, %s42, %s43
      %p47 = pneg %p41
      %p48 = scmp.eq.s32.totalorder %s18, 1
      %p49 = por %p47, %p48
      %p50 = scmp.ne.s32.totalorder %s42, %s45
      %p51 = scmp.eq.s32.totalorder %s18, 0
      %p52 = por %p50, %p51
      %p53 = scmp.ne.s32.totalorder %s42, %s45
      %p54 = scmp.eq.s32.totalorder %s23, 1
      %p55 = por %p53, %p54
      %p56 = scmp.ne.s32.totalorder %s45, %s46
      %p57 = scmp.eq.s32.totalorder %s23, 0
      %p58 = por %p56, %p57
      %p59 = scmp.ne.s32.totalorder %s45, %s46
      %p60 = scmp.eq.s32.totalorder %s24, 1
      %p61 = por %p59, %p60
      %p63 = scmp.ne.s32.totalorder %s46, %s62
      %p64 = scmp.eq.s32.totalorder %s24, 0
      %p65 = por %p63, %p64
      %s66 = ssub.s32 %s25, %s37
      %s67 = ssub.s32 %s26, %s33
      %s68 = sor.u32 %s66, %s67
      %p69 = scmp.eq.s32.totalorder %s68, 0
      %s71 = sadd.s32 %s70, 1
      %s72 = scalar_select %p69, %s70, %s71
      %p75 = pneg %p69
      %p76 = scmp.eq.s32.totalorder %s18, 1
      %p77 = por %p75, %p76
      %p78 = scmp.ne.s32.totalorder %s70, %s73
      %p79 = scmp.eq.s32.totalorder %s18, 0
      %p80 = por %p78, %p79
      %p81 = scmp.ne.s32.totalorder %s70, %s73
      %p82 = scmp.eq.s32.totalorder %s23, 1
      %p83 = por %p81, %p82
      %p84 = scmp.ne.s32.totalorder %s73, %s74
      %p85 = scmp.eq.s32.totalorder %s23, 0
      %p86 = por %p84, %p85
      %p87 = scmp.ne.s32.totalorder %s73, %s74
      %p88 = scmp.eq.s32.totalorder %s24, 1
      %p89 = por %p87, %p88
      %p91 = scmp.ne.s32.totalorder %s74, %s90
      %p92 = scmp.eq.s32.totalorder %s24, 0
      %p93 = por %p91, %p92
      %s94 = ssub.s32 %s25, %s37
      %s95 = ssub.s32 %s26, %s33
      %s96 = sor.u32 %s94, %s95
      %p97 = scmp.eq.s32.totalorder %s96, 0
      %s99 = sadd.s32 %s98, 1
      %s100 = scalar_select %p97, %s98, %s99
      %p103 = pneg %p97
      %p104 = scmp.eq.s32.totalorder %s18, 1
      %p105 = por %p103, %p104
      %p106 = scmp.ne.s32.totalorder %s98, %s101
      %p107 = scmp.eq.s32.totalorder %s18, 0
      %p108 = por %p106, %p107
      %p109 = scmp.ne.s32.totalorder %s98, %s101
      %p110 = scmp.eq.s32.totalorder %s23, 1
      %p111 = por %p109, %p110
      %p112 = scmp.ne.s32.totalorder %s101, %s102
      %p113 = scmp.eq.s32.totalorder %s23, 0
      %p114 = por %p112, %p113
      %p115 = scmp.ne.s32.totalorder %s101, %s102
      %p116 = scmp.eq.s32.totalorder %s24, 1
      %p117 = por %p115, %p116
      %p119 = scmp.ne.s32.totalorder %s102, %s118
      %p120 = scmp.eq.s32.totalorder %s24, 0
      %p121 = por %p119, %p120
      %s122 = ssub.s32 %s25, %s37
      %p123 = scmp.eq.s32.totalorder %s122, 0
      %s125 = sadd.s32 %s124, 1
      %s126 = scalar_select %p123, %s124, %s125
      %p129 = pneg %p123
      %p130 = scmp.eq.s32.totalorder %s18, 1
      %p131 = por %p129, %p130
      %p132 = scmp.ne.s32.totalorder %s124, %s127
      %p133 = scmp.eq.s32.totalorder %s18, 0
      %p134 = por %p132, %p133
      %p135 = scmp.ne.s32.totalorder %s124, %s127
      %p136 = scmp.eq.s32.totalorder %s23, 1
      %p137 = por %p135, %p136
      %p138 = scmp.ne.s32.totalorder %s127, %s128
      %p139 = scmp.eq.s32.totalorder %s23, 0
      %p140 = por %p138, %p139
      %p141 = scmp.ne.s32.totalorder %s127, %s128
      %p142 = scmp.eq.s32.totalorder %s24, 1
      %p143 = por %p141, %p142
      %p145 = scmp.ne.s32.totalorder %s128, %s144
      %p146 = scmp.eq.s32.totalorder %s24, 0
      %p147 = por %p145, %p146
      %p148 = scmp.le.s32.totalorder 1, %s18
      %p149 = scmp.lt.s32.totalorder %s18, 3
      %p150 = pnand %p148, %p149
      %p151 = pneg %p150
      // Predicated region
      $region9: #{tpu_custom_call.1} parent=5 // pred_check
        _
      $region10: #{tpu_custom_call.1} parent=5 // pred_check_branch
        %153 = sbr.rel (%p150) target = $region12
      $region11: #{tpu_custom_call.1} parent=5 // pred_region
        %s154 = ssub.s32 %s18, 1
      $region12: #{tpu_custom_call.1} parent=5 // pred_fallthru
        _
      %p155 = scmp.lt.s32.totalorder %s18, 2
      // Predicated region
      $region13: #{tpu_custom_call.1} parent=5 // pred_check
        %p156 = pneg %p155
      $region14: #{tpu_custom_call.1} parent=5 // pred_check_branch
        %158 = sbr.rel (%p156) target = $region16
      $region15: #{tpu_custom_call.1} parent=5 // pred_region
        // Predicated region
        $region17: #{tpu_custom_call.1} parent=15 // pred_check
          %p159 = pneg %p52
        $region18: #{tpu_custom_call.1} parent=15 // pred_check_branch
          %161 = sbr.rel (%p159) target = $region20
        $region19: #{tpu_custom_call.1} parent=15 // pred_region
          %s162 = sand.u32 %s42, 1
          %s163 = scalar_lea.sflag [#allocation4], %s162
          %s164 = sand.u32 %s42, 1
          %s165 = smul.addr %s164, 16
          %s166 = scalar_lea.vmem [#allocation3], %s165
          %s167 = smul.u32 2, %s26
          %s169 = ssub.s32 256, 256
          %170 = vsyncadd %s163, %s169
          %s171 = smul.addr %s25, 2
          %s172 = sadd.s32 %s167, %s171
          %s173 = smul.addr %s172, 128
          %s174 = scalar_lea.hbm %s0, %s173
          %s176 = sshll.u32 %s166, 4
          %s177 = int_to_ptr.vmem [resolvable:$true] %s176
          %179 = dma.hbm_to_vmem [thread:$0]  %s174, 256, %s177, %s163
        $region20: #{tpu_custom_call.1} parent=15 // pred_fallthru
          _
        // Predicated region
        $region21: #{tpu_custom_call.1} parent=15 // pred_check
          %p180 = pneg %p80
        $region22: #{tpu_custom_call.1} parent=15 // pred_check_branch
          %182 = sbr.rel (%p180) target = $region24
        $region23: #{tpu_custom_call.1} parent=15 // pred_region
          %s183 = sand.u32 %s18, 1
          %s184 = scalar_lea.sflag [#allocation7], %s183
          %s185 = sand.u32 %s70, 1
          %s186 = smul.addr %s185, 8
          %s187 = scalar_lea.vmem [#allocation6], %s186
          %s188 = smul.u32 2, %s26
          %s190 = ssub.s32 128, 128
          %191 = vsyncadd %s184, %s190
          %s192 = smul.addr %s25, 2
          %s193 = sadd.s32 %s188, %s192
          %s194 = smul.addr %s193, 64
          %s195 = scalar_lea.hbm %s1, %s194
          %s197 = sshll.u32 %s187, 4
          %s198 = int_to_ptr.vmem [resolvable:$true] %s197
          %200 = dma.hbm_to_vmem [thread:$0]  %s195, 128, %s198, %s184
        $region24: #{tpu_custom_call.1} parent=15 // pred_fallthru
          _
        // Predicated region
        $region25: #{tpu_custom_call.1} parent=15 // pred_check
          %p201 = pneg %p108
        $region26: #{tpu_custom_call.1} parent=15 // pred_check_branch
          %203 = sbr.rel (%p201) target = $region28
        $region27: #{tpu_custom_call.1} parent=15 // pred_region
          %s204 = sand.u32 %s18, 1
          %s205 = scalar_lea.sflag [#allocation7], %s204
          %s206 = sand.u32 %s98, 1
          %s207 = smul.addr %s206, 2
          %s208 = scalar_lea.vmem [#allocation8], %s207
          %s209 = smul.u32 2, %s26
          %s211 = ssub.s32 32, 32
          %212 = vsyncadd %s205, %s211
          %s213 = smul.addr %s25, 2
          %s214 = sadd.s32 %s209, %s213
          %s215 = smul.addr %s214, 16
          %s216 = scalar_lea.hbm %s2, %s215
          %s218 = sshll.u32 %s208, 4
          %s219 = int_to_ptr.vmem [resolvable:$true] %s218
          %221 = dma.hbm_to_vmem [thread:$0]  %s216, 32, %s219, %s205
        $region28: #{tpu_custom_call.1} parent=15 // pred_fallthru
          _
      $region16: #{tpu_custom_call.1} parent=5 // pred_fallthru
        _
      %p222 = scmp.le.s32.totalorder 1, %s18
      %p223 = scmp.lt.s32.totalorder %s18, 3
      %p224 = pnand %p222, %p223
      %p225 = pneg %p224
      // Predicated region
      $region29: #{tpu_custom_call.1} parent=5 // pred_check
        _
      $region30: #{tpu_custom_call.1} parent=5 // pred_check_branch
        %227 = sbr.rel (%p224) target = $region32
      $region31: #{tpu_custom_call.1} parent=5 // pred_region
        %s228 = ssub.s32 %s18, 1
        %s229 = sand.u32 %s45, 1
        %s230 = scalar_lea.sflag [#allocation4], %s229
        %s231 = sand.u32 %s45, 1
        %s232 = smul.addr %s231, 16
        %s233 = scalar_lea.vmem [#allocation3], %s232
        // Predicated region
        $region33: #{tpu_custom_call.1} parent=31 // pred_check
          %p234 = pneg %p58
        $region34: #{tpu_custom_call.1} parent=31 // pred_check_branch
          %236 = sbr.rel (%p234) target = $region36
        $region35: #{tpu_custom_call.1} parent=31 // pred_region
          %237 = dma.done %s230, 256
        $region36: #{tpu_custom_call.1} parent=31 // pred_fallthru
          _
        %s238 = sand.u32 %s23, 1
        %s239 = scalar_lea.sflag [#allocation7], %s238
        %s240 = sand.u32 %s73, 1
        %s241 = smul.addr %s240, 8
        %s242 = scalar_lea.vmem [#allocation6], %s241
        // Predicated region
        $region37: #{tpu_custom_call.1} parent=31 // pred_check
          %p243 = pneg %p86
        $region38: #{tpu_custom_call.1} parent=31 // pred_check_branch
          %245 = sbr.rel (%p243) target = $region40
        $region39: #{tpu_custom_call.1} parent=31 // pred_region
          %246 = dma.done %s239, 128
        $region40: #{tpu_custom_call.1} parent=31 // pred_fallthru
          _
        %s247 = sand.u32 %s23, 1
        %s248 = scalar_lea.sflag [#allocation7], %s247
        %s249 = sand.u32 %s101, 1
        %s250 = smul.addr %s249, 2
        %s251 = scalar_lea.vmem [#allocation8], %s250
        // Predicated region
        $region41: #{tpu_custom_call.1} parent=31 // pred_check
          %p252 = pneg %p114
        $region42: #{tpu_custom_call.1} parent=31 // pred_check_branch
          %254 = sbr.rel (%p252) target = $region44
        $region43: #{tpu_custom_call.1} parent=31 // pred_region
          %255 = dma.done %s248, 32
        $region44: #{tpu_custom_call.1} parent=31 // pred_fallthru
          _
        %s256 = sand.u32 %s45, 1
        %s257 = scalar_lea.sflag [#allocation4], %s256
        %s258 = sand.u32 %s45, 1
        %s259 = smul.addr %s258, 16
        %s260 = scalar_lea.vmem [#allocation3], %s259
        %p261 = pneg %p58
        %p262 = pneg %p55
        %s263 = sand.u32 %s23, 1
        %s264 = scalar_lea.sflag [#allocation7], %s263
        %s265 = sand.u32 %s73, 1
        %s266 = smul.addr %s265, 8
        %s267 = scalar_lea.vmem [#allocation6], %s266
        %p268 = pneg %p86
        %p269 = pneg %p83
        %s270 = sand.u32 %s23, 1
        %s271 = scalar_lea.sflag [#allocation7], %s270
        %s272 = sand.u32 %s101, 1
        %s273 = smul.addr %s272, 2
        %s274 = scalar_lea.vmem [#allocation8], %s273
        %p275 = pneg %p114
        %p276 = pneg %p111
        %p277 = pneg %p140
        %p278 = pneg %p137
        %s279 = sand.u32 %s127, 1
        %s280 = scalar_lea.sflag [#allocation5], %s279
        %s281 = sand.u32 %s127, 1
        %s282 = scalar_lea.vmem [#allocation9], %s281
        %s283 = smul.u32 2, %s28
        %s284 = smul.u32 2, %s28
        %s285 = smul.u32 2, %s28
        %p286 = scmp.eq.s32.totalorder %s28, 0
        // Predicated region
        $region45: #{tpu_custom_call.1} parent=31 // pred_check
          %p287 = pneg %p286
        $region46: #{tpu_custom_call.1} parent=31 // pred_check_branch
          %289 = sbr.rel (%p287) target = $region48
        $region47: #{tpu_custom_call.1} parent=31 // pred_region
          %v290 = vlaneseq
          %vm291 = vcmp.ge.s32.totalorder %v290, 0
          %vm292 = vcmp.lt.s32.totalorder %v290, 256
          %vm293 = vmand %vm291, %vm292
          %294 = vst.msk [vmem:[#allocation2] sm:$0x3] %vm293, 0.0
        $region48: #{tpu_custom_call.1} parent=31 // pred_fallthru
          _
        %v295 = vld [vmem:[%s233] sm:$0x3f]
        %v296 = vld [vmem:[%s233 + $0x8] sm:$0x3f]
        %v297 = vld [vmem:[%s242] sm:$0xff]
        %vm298 = vcmask 1045504
        %v299 = vsel %vm298, %v295, -inf
        %v300 = vrot.slane %v299, 4
        %v301 = vmax.f32 %v299, %v300
        %v302 = vrot.slane %v301, 2
        %v303 = vmax.f32 %v301, %v302
        %v304 = vrot.slane %v303, 1
        %v305 = vmax.f32 %v303, %v304
        %v306 = vsel %vm298, %v296, -inf
        %v307 = vrot.slane %v306, 4
        %v308 = vmax.f32 %v306, %v307
        %v309 = vrot.slane %v308, 2
        %v310 = vmax.f32 %v308, %v309
        %v311 = vrot.slane %v310, 1
        %v312 = vmax.f32 %v310, %v311
        %v313 = vsub.f32 %v295, %v305
        %v314 = vsub.f32 %v296, %v312
        %v315 = vmul.f32 %v313, 1.442695
        %v316 = vpow.pop %v315
        %v317 = vmul.f32 %v314, 1.442695
        %v318 = vpow.pop %v317
        %v319 = vsel %vm298, %v316, 0.0
        %v320 = vrot.slane %v319, 4
        %v321 = vadd.f32 %v319, %v320
        %v322 = vrot.slane %v321, 2
        %v323 = vadd.f32 %v321, %v322
        %v324 = vrot.slane %v323, 1
        %v325 = vadd.f32 %v323, %v324
        %v326 = vsel %vm298, %v318, 0.0
        %v327 = vrot.slane %v326, 4
        %v328 = vadd.f32 %v326, %v327
        %v329 = vrot.slane %v328, 2
        %v330 = vadd.f32 %v328, %v329
        %v331 = vrot.slane %v330, 1
        %v332 = vadd.f32 %v330, %v331
        %v333 = vlog2.pop %v325
        %v334 = vmul.f32 %v333, 0.6931472
        %v335 = vlog2.pop %v332
        %v336 = vmul.f32 %v335, 0.6931472
        %v337 = vadd.f32 %v305, %v334
        %v338 = vadd.f32 %v312, %v336
        %v341 = vrot.slane %v316, 4
        %v342 = vrot.slane %v318, 4
        %vm345 = vcmask 1041408
        %v346 = vsel %vm345, %v341, 0.0
        %v347 = vrot.slane %v346, 4
        %v348 = vadd.f32 %v346, %v347
        %v349 = vrot.slane %v348, 2
        %v350 = vadd.f32 %v348, %v349
        %v351 = vrot.slane %v350, 1
        %v352 = vadd.f32 %v350, %v351
        %v353 = vsel %vm345, %v342, 0.0
        %v354 = vrot.slane %v353, 4
        %v355 = vadd.f32 %v353, %v354
        %v356 = vrot.slane %v355, 2
        %v357 = vadd.f32 %v355, %v356
        %v358 = vrot.slane %v357, 1
        %v359 = vadd.f32 %v357, %v358
        %v360 = vadd.f32 %v316, %v352
        %v361 = vadd.f32 %v318, %v359
        %v362 = vmax.f32 %v360, 1e-37
        %v363 = vmax.f32 %v361, 1e-37
        %v364 = vlog2.pop %v362
        %v365 = vmul.f32 %v364, 0.6931472
        %v366 = vlog2.pop %v363
        %v367 = vmul.f32 %v366, 0.6931472
        %v368 = vadd.f32 %v305, %v365
        %v369 = vadd.f32 %v312, %v367
        %v371 = vcombine.high %v297, %v297
        %vm373 = vcmask 1043456
        %v374 = vsel %vm373, %v297, -inf
        %v375 = vrot.slane %v374, 4
        %v376 = vmax.f32 %v374, %v375
        %v377 = vrot.slane %v376, 2
        %v378 = vmax.f32 %v376, %v377
        %v379 = vrot.slane %v378, 1
        %v380 = vmax.f32 %v378, %v379
        %v381 = vsel %vm373, %v371, -inf
        %v382 = vrot.slane %v381, 4
        %v383 = vmax.f32 %v381, %v382
        %v384 = vrot.slane %v383, 2
        %v385 = vmax.f32 %v383, %v384
        %v386 = vrot.slane %v385, 1
        %v387 = vmax.f32 %v385, %v386
        %v390 = vcombine.low %v380, %v387
        %v392 = vsub.f32 %v297, %v390
        %v393 = vmul.f32 %v392, 1.442695
        %v394 = vpow.pop %v393
        %v396 = vcombine.high %v394, %v394
        %v398 = vsel %vm373, %v394, 0.0
        %v399 = vrot.slane %v398, 4
        %v400 = vadd.f32 %v398, %v399
        %v401 = vrot.slane %v400, 2
        %v402 = vadd.f32 %v400, %v401
        %v403 = vrot.slane %v402, 1
        %v404 = vadd.f32 %v402, %v403
        %v405 = vsel %vm373, %v396, 0.0
        %v406 = vrot.slane %v405, 4
        %v407 = vadd.f32 %v405, %v406
        %v408 = vrot.slane %v407, 2
        %v409 = vadd.f32 %v407, %v408
        %v410 = vrot.slane %v409, 1
        %v411 = vadd.f32 %v409, %v410
        %v412 = vrcp.pop %v404
        %v413 = vmul.f32 1.0, %v412
        %v414 = vrcp.pop %v411
        %v415 = vmul.f32 1.0, %v414
        %v418 = vcombine.low %v413, %v415
        %v420 = vmul.f32 %v394, %v418
        %v423 = vcombine.low %v295, %v296
        %v425 = vmul.f32 %v394, %v423
        %v427 = vcombine.high %v425, %v425
        %v428 = vrot.slane %v425, 1
        %v429 = vrot.slane %v427, 1
        %vm432 = vcmask 1042432
        %v433 = vsel %vm432, %v428, 0.0
        %v434 = vrot.slane %v433, 4
        %v435 = vadd.f32 %v433, %v434
        %v436 = vrot.slane %v435, 2
        %v437 = vadd.f32 %v435, %v436
        %v438 = vrot.slane %v437, 1
        %v439 = vadd.f32 %v437, %v438
        %v440 = vsel %vm432, %v429, 0.0
        %v441 = vrot.slane %v440, 4
        %v442 = vadd.f32 %v440, %v441
        %v443 = vrot.slane %v442, 2
        %v444 = vadd.f32 %v442, %v443
        %v445 = vrot.slane %v444, 1
        %v446 = vadd.f32 %v444, %v445
        %v447 = vmul.f32 %v439, %v413
        %v448 = vmul.f32 %v446, %v415
        %v451 = vcombine.low %v368, %v369
        %v453 = vmul.f32 %v420, %v451
        %v456 = vcombine.low %v447, %v448
        %v458 = vadd.f32 %v453, %v456
        %v461 = vcombine.low %v337, %v338
        %v463 = vsub.f32 %v458, %v461
        %v464 = vld [vmem:[%s251] sm:$0x3]
        %v467 = vunpack.c.l.s4 286326784
        %v468 = vunpack.c.0.s8 %v467
        %v469 = vlaneseq
        %v470 = vshrl.u32 %v469, 7
        %v471 = vsub.s32 %v468, %v470
        %v472 = vrot.slane %v464, %v471
        %v474 = vmul.f32 %v463, %v472
        %v475 = vld [vmem:[#allocation2] sm:$0x3]
        %v478 = vunpack.c.l.s4 1966171168
        %v479 = vunpack.c.0.s8 %v478
        %v480 = vlaneseq
        %v481 = vshrl.u32 %v480, 7
        %v482 = vsub.s32 %v479, %v481
        %v483 = vrot.slane %v474, %v482
        %v485 = vunpack.c.l.s4 1966171168
        %v486 = vunpack.c.0.s8 %v485
        %v487 = vlaneseq
        %v488 = vshrl.u32 %v487, 7
        %v489 = vsub.s32 %v486, %v488
        %v490 = vrot.slane %v483, %v489
        %v492 = vadd.f32 %v475, %v490
        %v493 = vlaneseq
        %vm494 = vcmp.ge.s32.totalorder %v493, 0
        %vm495 = vcmp.lt.s32.totalorder %v493, 256
        %vm496 = vmand %vm494, %vm495
        %497 = vst.msk [vmem:[#allocation2] sm:$0x3] %vm496, %v492
        // Predicated region
        $region49: #{tpu_custom_call.1} parent=31 // pred_check
          %p498 = pneg %p286
        $region50: #{tpu_custom_call.1} parent=31 // pred_check_branch
          %500 = sbr.rel (%p498) target = $region52
        $region51: #{tpu_custom_call.1} parent=31 // pred_region
          %v501 = vld [vmem:[#allocation2] sm:$0x3]
          %v503 = vlaneseq
          %v504 = vshrl.u32 %v503, 7
          %v505 = vsub.s32 0, %v504
          %v506 = vrot.slane %v501, %v505
          %v507 = vlaneseq
          %v508 = vshrl.u32 %v507, 7
          %v509 = vsub.s32 1, %v508
          %v510 = vrot.slane %v501, %v509
          %vm513 = vcmask 1040384
          %v514 = vsel %vm513, %v506, 0.0
          %v515 = vsel %vm513, %v510, 0.0
          %v516 = vadd.f32 %v514, %v515
          %517 = vadd.xlane.f32.xlu0 %v516
          %v518 = vpop.xlane.xlu0 %517
          %v519 = vrot.slane %v518, 4
          %v520 = vadd.f32 %v518, %v519
          %v521 = vrot.slane %v520, 2
          %v522 = vadd.f32 %v520, %v521
          %v523 = vrot.slane %v522, 1
          %v524 = vadd.f32 %v522, %v523
          %s525 = vtos %v524
          %v526 = vstv %s525
          %vm527 = vcmask 0
          %528 = vst.msk [vmem:[%s282] sm:$0x1] %vm527, %v526
        $region52: #{tpu_custom_call.1} parent=31 // pred_fallthru
          _
        %s529 = sand.u32 %s127, 1
        %s530 = scalar_lea.sflag [#allocation5], %s529
        %s531 = sand.u32 %s127, 1
        %s532 = scalar_lea.vmem [#allocation9], %s531
        // Predicated region
        $region53: #{tpu_custom_call.1} parent=31 // pred_check
          %p533 = pneg %p137
        $region54: #{tpu_custom_call.1} parent=31 // pred_check_branch
          %535 = sbr.rel (%p533) target = $region56
        $region55: #{tpu_custom_call.1} parent=31 // pred_region
          %s537 = ssub.s32 16, 16
          %538 = vsyncadd %s530, %s537
          %s539 = smul.addr %s27, 16
          %s540 = scalar_lea.hbm %s3, %s539
          %s542 = sshll.u32 %s532, 4
          %s543 = int_to_ptr.vmem [resolvable:$true] %s542
          %545 = dma.vmem_to_hbm [thread:$0]  %s543, 16, %s540, %s530
        $region56: #{tpu_custom_call.1} parent=31 // pred_fallthru
          _
      $region32: #{tpu_custom_call.1} parent=5 // pred_fallthru
        _
      %p546 = scmp.le.s32.totalorder 2, %s18
      // Predicated region
      $region57: #{tpu_custom_call.1} parent=5 // pred_check
        %p547 = pneg %p546
      $region58: #{tpu_custom_call.1} parent=5 // pred_check_branch
        %549 = sbr.rel (%p547) target = $region60
      $region59: #{tpu_custom_call.1} parent=5 // pred_region
        %s550 = ssub.s32 %s18, 2
        // Predicated region
        $region61: #{tpu_custom_call.1} parent=59 // pred_check
          %p551 = pneg %p143
        $region62: #{tpu_custom_call.1} parent=59 // pred_check_branch
          %553 = sbr.rel (%p551) target = $region64
        $region63: #{tpu_custom_call.1} parent=59 // pred_region
          %s554 = sand.u32 %s128, 1
          %s555 = scalar_lea.sflag [#allocation5], %s554
          %s556 = sand.u32 %s128, 1
          %s557 = scalar_lea.vmem [#allocation9], %s556
          %558 = dma.done %s555, 16
        $region64: #{tpu_custom_call.1} parent=59 // pred_fallthru
          _
      $region60: #{tpu_custom_call.1} parent=5 // pred_fallthru
        _
    $region6: #{tpu_custom_call.1} parent=1 // loop_footer
      %s22 = sadd.s32 1, %s18
    $region7: #{tpu_custom_call.1} parent=1 // loop_footer_branch
      %17 = sbr.rel target = $region3
    $region8: #{tpu_custom_call.1} parent=1 // loop_exit
      _
    %559 = vsyncpa [#allocation4], 1
    %s560 = scalar_lea.sflag [#allocation4], 1
    %561 = vsyncpa %s560, 1
    %562 = vsyncpa [#allocation7], 1
    %s563 = scalar_lea.sflag [#allocation7], 1
    %564 = vsyncpa %s563, 1
    %565 = vsyncpa [#allocation5], 1
    %s566 = scalar_lea.sflag [#allocation5], 1
    %567 = vsyncpa %s566, 1

</llo_original>
